<compile_context>
chip_gen: v7x
topology: tpu7x:2x2x1
jax: 0.10.0
libtpu: 0.0.40
codegen_flags: <defaults>
</compile_context>

<pallas_src>
import jax
import jax.numpy as jnp
from jax.experimental import pallas as pl
from jax.experimental.pallas import tpu as pltpu

# ---- model dimensions (small, synthetic "t5-small"-like stub) ---------------
B = 2        # batch
S = 8        # sequence length
D = 32       # hidden size
V = 128      # vocab size (lane-dense)
N = B * S    # token rows


def policy_sample_kernel(ids_ref, emb_ref, wenc_ref, wlm_ref, act_ref, lp_ref):
    """Fused embedding gather + encoder stub + lm_head + softmax argmax/max.

    ids_ref : [N, 1] int32  token ids                  (VMEM)
    emb_ref : [V, D] f32    embedding table            (VMEM)
    wenc_ref: [D, D] f32    encoder-stub weight        (VMEM)
    wlm_ref : [D, V] f32    lm_head weight             (VMEM)
    act_ref : [1]    int32  flattened argmax over [N,V] (SMEM)
    lp_ref  : [1]    f32    global max softmax prob     (SMEM)
    """
    ids = ids_ref[...]                                                  # [N, 1]
    n = ids.shape[0]
    v = emb_ref.shape[0]

    # Embedding gather as a one-hot matmul on the MXU (exact: 0/1 weights).
    col_iota = jax.lax.broadcasted_iota(jnp.int32, (n, v), 1)
    one_hot = (col_iota == ids).astype(jnp.float32)                     # [N, V]
    emb = jnp.dot(one_hot, emb_ref[...],
                  preferred_element_type=jnp.float32)                   # [N, D]

    # Encoder stub + lm_head.  TODO(synk): real T5 attention stack not here.
    h = jnp.tanh(jnp.dot(emb, wenc_ref[...],
                         preferred_element_type=jnp.float32))           # [N, D]
    logits = jnp.dot(h, wlm_ref[...],
                     preferred_element_type=jnp.float32)                # [N, V]

    # Softmax is monotone per row: per-row argmax == argmax of logits, and the
    # per-row peak probability is exp(row_max - row_max)/denom = 1/denom.
    row_max = jnp.max(logits, axis=-1, keepdims=True)                   # [N, 1]
    col_cand = jnp.where(logits == row_max, col_iota, jnp.int32(v))     # exact compare (same values)
    col = jnp.min(col_cand, axis=-1, keepdims=True)                     # [N, 1] first-occurrence col

    denom = jnp.sum(jnp.exp(logits - row_max), axis=-1, keepdims=True)  # [N, 1]
    peak = pl.reciprocal(denom, approx=True)                            # [N, 1] per-row max prob (EUP)

    gmax = jnp.max(peak)                                                # global max probability
    row_iota = jax.lax.broadcasted_iota(jnp.int32, (n, 1), 0)
    flat_cand = jnp.where(peak == gmax, row_iota * v + col, jnp.int32(n * v))
    act = jnp.min(flat_cand)                                            # first-occurrence flat argmax

    act_ref[0] = act
    lp_ref[0] = gmax


def make_params(key):
    k_emb, k_enc, k_lm = jax.random.split(key, 3)
    return {
        # deterministic synthetic weights (stand-in for the pretrained T5)
        "embedding": jax.random.normal(k_emb, (V, D), jnp.float32) * 0.5,
        "w_enc": jax.random.normal(k_enc, (D, D), jnp.float32) * 0.3,
        "w_lm": jax.random.normal(k_lm, (D, V), jnp.float32) * 0.4,
    }


@jax.jit
def policy_sample(state_ids, params):
    """Mirrors Policy.sample(state) -> (action, action_logprob)."""
    ids = state_ids.reshape(N, 1).astype(jnp.int32)
    act, lp = pl.pallas_call(
        policy_sample_kernel,
        out_shape=(jax.ShapeDtypeStruct((1,), jnp.int32),
                   jax.ShapeDtypeStruct((1,), jnp.float32)),
        in_specs=[
            pl.BlockSpec(memory_space=pltpu.MemorySpace.VMEM),   # ids
            pl.BlockSpec(memory_space=pltpu.MemorySpace.VMEM),   # embedding
            pl.BlockSpec(memory_space=pltpu.MemorySpace.VMEM),   # w_enc
            pl.BlockSpec(memory_space=pltpu.MemorySpace.VMEM),   # w_lm
        ],
        out_specs=(
            pl.BlockSpec(memory_space=pltpu.MemorySpace.SMEM),   # action index
            pl.BlockSpec(memory_space=pltpu.MemorySpace.SMEM),   # max prob
        ),
        # NOTE: at real T5 scale, add a vocab grid axis ("arbitrary"), bf16
        # matmul inputs, and pltpu.CompilerParams(vmem_limit_bytes=...).
    )(ids, params["embedding"], params["w_enc"], params["w_lm"])
    return act[0], lp[0]


def _reference(state_ids, params):
    emb = params["embedding"][state_ids]                              # [B, S, D]
    h = jnp.tanh(jnp.einsum("bsd,de->bse", emb, params["w_enc"],
                            precision=jax.lax.Precision.HIGHEST))
    logits = jnp.einsum("bsd,dv->bsv", h, params["w_lm"],
                        precision=jax.lax.Precision.HIGHEST)
    p = jax.nn.softmax(logits, axis=-1)
    return jnp.argmax(p), jnp.max(p)


if __name__ == "__main__":
    key = jax.random.PRNGKey(0)
    k_params, k_state = jax.random.split(key)
    params = make_params(k_params)
    # "state" = token ids, as fed to a T5 model
    state = jax.random.randint(k_state, (B, S), 0, V, dtype=jnp.int32)

    action, action_logprob = jax.block_until_ready(policy_sample(state, params))

    ref_action, ref_lp = _reference(state, params)
    assert int(action) == int(ref_action), (int(action), int(ref_action))
    assert jnp.allclose(action_logprob, ref_lp, atol=2e-3, rtol=1e-2), (
        float(action_logprob), float(ref_lp))

    print("KERNEL_OK")
</pallas_src>

<mosaic_0001>
module attributes {stable_mosaic.version = 11 : i64} {
  func.func @policy_sample_kernel(%arg0: memref<16x1xi32, #tpu.memory_space<vmem>>, %arg1: memref<128x32xf32, #tpu.memory_space<vmem>>, %arg2: memref<32x32xf32, #tpu.memory_space<vmem>>, %arg3: memref<32x128xf32, #tpu.memory_space<vmem>>, %arg4: memref<1xi32, #tpu.memory_space<smem>>, %arg5: memref<1xf32, #tpu.memory_space<smem>>) attributes {dimension_semantics = [], scalar_prefetch = 0 : i64, scratch_operands = 0 : i64, tpu.core_type = #tpu.core_type<tc>} {
    %c0 = arith.constant 0 : index
    %c0_0 = arith.constant 0 : index
    %0 = vector.load %arg0[%c0, %c0_0] : memref<16x1xi32, #tpu.memory_space<vmem>>, vector<16x1xi32>
    %1 = tpu.iota {dimensions = array<i32: 1>} : vector<16x128xi32>
    %2 = vector.broadcast %0 : vector<16x1xi32> to vector<16x128xi32>
    %3 = arith.cmpi eq, %1, %2 : vector<16x128xi32>
    %4 = arith.extui %3 : vector<16x128xi1> to vector<16x128xi32>
    %5 = arith.sitofp %4 : vector<16x128xi32> to vector<16x128xf32>
    %c0_1 = arith.constant 0 : index
    %c0_2 = arith.constant 0 : index
    %6 = vector.load %arg1[%c0_1, %c0_2] : memref<128x32xf32, #tpu.memory_space<vmem>>, vector<128x32xf32>
    %cst = arith.constant dense<0.000000e+00> : vector<16x32xf32>
    %7 = tpu.matmul %5, %6, %cst {dimension_numbers = #tpu.dot_dimension_numbers<[1], [0], [0], [1], [0, 0, 1, 1], [], []>} : vector<16x128xf32>, vector<128x32xf32>, vector<16x32xf32> -> vector<16x32xf32>
    %c0_3 = arith.constant 0 : index
    %c0_4 = arith.constant 0 : index
    %8 = vector.load %arg2[%c0_3, %c0_4] : memref<32x32xf32, #tpu.memory_space<vmem>>, vector<32x32xf32>
    %cst_5 = arith.constant dense<0.000000e+00> : vector<16x32xf32>
    %9 = tpu.matmul %7, %8, %cst_5 {dimension_numbers = #tpu.dot_dimension_numbers<[1], [0], [0], [1], [0, 0, 1, 1], [], []>} : vector<16x32xf32>, vector<32x32xf32>, vector<16x32xf32> -> vector<16x32xf32>
    %10 = math.tanh %9 : vector<16x32xf32>
    %c0_6 = arith.constant 0 : index
    %c0_7 = arith.constant 0 : index
    %11 = vector.load %arg3[%c0_6, %c0_7] : memref<32x128xf32, #tpu.memory_space<vmem>>, vector<32x128xf32>
    %cst_8 = arith.constant dense<0.000000e+00> : vector<16x128xf32>
    %12 = tpu.matmul %10, %11, %cst_8 {dimension_numbers = #tpu.dot_dimension_numbers<[1], [0], [0], [1], [0, 0, 1, 1], [], []>} : vector<16x32xf32>, vector<32x128xf32>, vector<16x128xf32> -> vector<16x128xf32>
    %cst_9 = arith.constant dense<0xFF800000> : vector<16xf32>
    %13 = vector.multi_reduction <maximumf>, %12, %cst_9 [1] : vector<16x128xf32> to vector<16xf32>
    %14 = vector.shape_cast %13 : vector<16xf32> to vector<16x1xf32>
    %15 = vector.broadcast %14 : vector<16x1xf32> to vector<16x128xf32>
    %16 = arith.cmpf oeq, %12, %15 : vector<16x128xf32>
    %c128_i32 = arith.constant 128 : i32
    %17 = vector.broadcast %c128_i32 : i32 to vector<16x128xi32>
    %18 = arith.select %16, %1, %17 : vector<16x128xi1>, vector<16x128xi32>
    %cst_10 = arith.constant dense<2147483647> : vector<16xi32>
    %19 = vector.multi_reduction <minsi>, %18, %cst_10 [1] : vector<16x128xi32> to vector<16xi32>
    %20 = vector.shape_cast %19 : vector<16xi32> to vector<16x1xi32>
    %21 = vector.broadcast %14 : vector<16x1xf32> to vector<16x128xf32>
    %22 = arith.subf %12, %21 : vector<16x128xf32>
    %23 = math.exp %22 : vector<16x128xf32>
    %cst_11 = arith.constant dense<0.000000e+00> : vector<16xf32>
    %24 = vector.multi_reduction <add>, %23, %cst_11 [1] : vector<16x128xf32> to vector<16xf32>
    %25 = vector.shape_cast %24 : vector<16xf32> to vector<16x1xf32>
    %26 = tpu.reciprocal %25 {approx = true} : vector<16x1xf32> -> vector<16x1xf32>
    %27 = vector.shape_cast %26 : vector<16x1xf32> to vector<1x16x1xf32>
    %cst_12 = arith.constant dense<0xFF800000> : vector<1xf32>
    %28 = vector.multi_reduction <maximumf>, %27, %cst_12 [1, 2] : vector<1x16x1xf32> to vector<1xf32>
    %29 = vector.shape_cast %28 : vector<1xf32> to vector<1x1x1xf32>
    %30 = vector.extract %29[0, 0, 0] : f32 from vector<1x1x1xf32>
    %31 = tpu.iota {dimensions = array<i32: 0>} : vector<16x1xi32>
    %32 = vector.broadcast %30 : f32 to vector<16x1xf32>
    %33 = arith.cmpf oeq, %26, %32 : vector<16x1xf32>
    %c128_i32_13 = arith.constant 128 : i32
    %34 = vector.broadcast %c128_i32_13 : i32 to vector<16x1xi32>
    %35 = arith.muli %31, %34 : vector<16x1xi32>
    %36 = arith.addi %35, %20 : vector<16x1xi32>
    %c2048_i32 = arith.constant 2048 : i32
    %37 = vector.broadcast %c2048_i32 : i32 to vector<16x1xi32>
    %38 = arith.select %33, %36, %37 : vector<16x1xi1>, vector<16x1xi32>
    %39 = vector.shape_cast %38 : vector<16x1xi32> to vector<1x16x1xi32>
    %cst_14 = arith.constant dense<2147483647> : vector<1xi32>
    %40 = vector.multi_reduction <minsi>, %39, %cst_14 [1, 2] : vector<1x16x1xi32> to vector<1xi32>
    %41 = vector.shape_cast %40 : vector<1xi32> to vector<1x1x1xi32>
    %42 = vector.extract %41[0, 0, 0] : i32 from vector<1x1x1xi32>
    %c0_15 = arith.constant 0 : index
    %43 = memref.load %arg4[%c0_15] : memref<1xi32, #tpu.memory_space<smem>>
    memref.store %42, %arg4[%c0_15] : memref<1xi32, #tpu.memory_space<smem>>
    %c0_16 = arith.constant 0 : index
    %44 = memref.load %arg5[%c0_16] : memref<1xf32, #tpu.memory_space<smem>>
    memref.store %30, %arg5[%c0_16] : memref<1xf32, #tpu.memory_space<smem>>
    return
  }
}

</mosaic_0001>

<llo_original>
// kernel: policy_sample.1
$region0: #{policy_sample.1}
  #allocation0 [shape = 'u32[]', space=smem, size = 0x4, offset = 0x4, fixed_abs, tag = 'smem constant byte address 0x4 - core index']
  #allocation1 [shape = 'u32[144,128]{1,0:T(1,128)}', space=vmem, size = 0x12000, scoped, tag = 'internal scratch']
  %s0 = inlined_call_operand.vmem [shape: s32[16,1], index: 0, kind: input, shape index: {}]
  %s1 = inlined_call_operand.vmem [shape: f32[128,32], index: 1, kind: input, shape index: {}]
  %s2 = inlined_call_operand.vmem [shape: f32[32,32], index: 2, kind: input, shape index: {}]
  %s3 = inlined_call_operand.vmem [shape: f32[32,128], index: 3, kind: input, shape index: {}]
  %s4 = inlined_call_operand.hbm [shape: s32[1], index: 4, kind: output, shape index: {0}]
  %s5 = inlined_call_operand.hbm [shape: f32[1], index: 5, kind: output, shape index: {1}]
  %6 = xla_tuple %s4, %s5
  %s7 = sld [smem:[#allocation0]]
  $region34: #{policy_sample.1} parent=0
    _
  %s9 = ssub.s32 1, %s7
  %s10 = scalar_select 0, %s9, %s7
  $region1: #{policy_sample.1} parent=0
    #allocation2 [shape = 'u8[512]{0}', space=smem, size = 0x200, scoped, tag = 'output window, operand 0, single buffered']
    #allocation3 [shape = 's32[1]{0}', space=sflag, size = 0x4, scoped, tag = 'scoped memory for policy_sample.1']
    #allocation4 [shape = 'u8[512]{0}', space=smem, size = 0x200, scoped, tag = 'output window, operand 1, single buffered']
    #allocation5 [shape = 's32[1]{0}', space=sflag, size = 0x4, scoped, tag = 'scoped memory for policy_sample.1']
    %11 = vsyncpa [#allocation3], 0
    %12 = vsyncpa [#allocation5], 0
    // Predicated region
    $region2: #{policy_sample.1} parent=1 // pred_check
      _
    $region3: #{policy_sample.1} parent=1 // pred_check_branch
      %14 = sbr.rel (0) target = $region5
    $region4: #{policy_sample.1} parent=1 // pred_region
      _
    $region5: #{policy_sample.1} parent=1 // pred_fallthru
      _
    // Predicated region
    $region6: #{policy_sample.1} parent=1 // pred_check
      _
    $region7: #{policy_sample.1} parent=1 // pred_check_branch
      %16 = sbr.rel (0) target = $region9
    $region8: #{policy_sample.1} parent=1 // pred_region
      _
    $region9: #{policy_sample.1} parent=1 // pred_fallthru
      _
    // Predicated region
    $region10: #{policy_sample.1} parent=1 // pred_check
      _
    $region11: #{policy_sample.1} parent=1 // pred_check_branch
      %18 = sbr.rel (0) target = $region13
    $region12: #{policy_sample.1} parent=1 // pred_region
      _
    $region13: #{policy_sample.1} parent=1 // pred_fallthru
      _
    // Predicated region
    $region14: #{policy_sample.1} parent=1 // pred_check
      _
    $region15: #{policy_sample.1} parent=1 // pred_check_branch
      %20 = sbr.rel (0) target = $region17
    $region16: #{policy_sample.1} parent=1 // pred_region
      _
    $region17: #{policy_sample.1} parent=1 // pred_fallthru
      _
    %v21 = vld [vmem:[%s0] sm:$0xff]
    %v22 = vld [vmem:[%s0 + $0x8] sm:$0xff]
    %v23 = vlaneseq
    %v24 = vand.u32 %v23, 127
    %25 = vset.pattern.permute.xlu0 0
    %26 = vperm.xlu0 %25, %v21
    %v27 = vpop.permute.xlu0 %26
    %28 = vset.pattern.permute.xlu0 0
    %29 = vperm.xlu0 %28, %v22
    %v30 = vpop.permute.xlu0 %29
    %vm31 = vcmp.eq.s32.totalorder %v24, %v27
    %vm32 = vcmp.eq.s32.totalorder %v24, %v30
    %v33 = vsel %vm31, 1, 0
    %v34 = vsel %vm32, 1, 0
    %v35 = vcvt.s32.f32 %v33
    %v36 = vcvt.s32.f32 %v34
    %v37 = vld [vmem:[%s1] sm:$0xff]
    %v38 = vld [vmem:[%s1 + $0x8] sm:$0xff]
    %v39 = vld [vmem:[%s1 + $0x10] sm:$0xff]
    %v40 = vld [vmem:[%s1 + $0x18] sm:$0xff]
    %v41 = vld [vmem:[%s1 + $0x20] sm:$0xff]
    %v42 = vld [vmem:[%s1 + $0x28] sm:$0xff]
    %v43 = vld [vmem:[%s1 + $0x30] sm:$0xff]
    %v44 = vld [vmem:[%s1 + $0x38] sm:$0xff]
    %v45 = vld [vmem:[%s1 + $0x40] sm:$0xff]
    %v46 = vld [vmem:[%s1 + $0x48] sm:$0xff]
    %v47 = vld [vmem:[%s1 + $0x50] sm:$0xff]
    %v48 = vld [vmem:[%s1 + $0x58] sm:$0xff]
    %v49 = vld [vmem:[%s1 + $0x60] sm:$0xff]
    %v50 = vld [vmem:[%s1 + $0x68] sm:$0xff]
    %v51 = vld [vmem:[%s1 + $0x70] sm:$0xff]
    %v52 = vld [vmem:[%s1 + $0x78] sm:$0xff]
    %53 = vmatprep.subr.mxu0 0.0
    %54 = vmatpush1.msra.mxu0 %v37
    %55 = vmatprep.subr.mxu0 0.0
    %56 = vmatpush1.msra.mxu0 %v38
    %57 = vmatprep.subr.mxu0 0.0
    %58 = vmatpush1.msra.mxu0 %v39
    %59 = vmatprep.subr.mxu0 0.0
    %60 = vmatpush1.msra.mxu0 %v40
    %61 = vmatprep.subr.mxu0 0.0
    %62 = vmatpush1.msra.mxu0 %v41
    %63 = vmatprep.subr.mxu0 0.0
    %64 = vmatpush1.msra.mxu0 %v42
    %65 = vmatprep.subr.mxu0 0.0
    %66 = vmatpush1.msra.mxu0 %v43
    %67 = vmatprep.subr.mxu0 0.0
    %68 = vmatpush1.msra.mxu0 %v44
    %69 = vmatprep.subr.mxu0 0.0
    %70 = vmatpush1.msra.mxu0 %v45
    %71 = vmatprep.subr.mxu0 0.0
    %72 = vmatpush1.msra.mxu0 %v46
    %73 = vmatprep.subr.mxu0 0.0
    %74 = vmatpush1.msra.mxu0 %v47
    %75 = vmatprep.subr.mxu0 0.0
    %76 = vmatpush1.msra.mxu0 %v48
    %77 = vmatprep.subr.mxu0 0.0
    %78 = vmatpush1.msra.mxu0 %v49
    %79 = vmatprep.subr.mxu0 0.0
    %80 = vmatpush1.msra.mxu0 %v50
    %81 = vmatprep.subr.mxu0 0.0
    %82 = vmatpush1.msra.mxu0 %v51
    %83 = vmatprep.subr.mxu0 0.0
    %84 = vmatpush1.msra.mxu0 %v52
    %85 = vmatprep.subr.mxu0 0.0
    %86 = vmatpush1.msra.mxu0 0.0
    %87 = vmatprep.subr.mxu0 0.0
    %88 = vmatpush1.msra.mxu0 0.0
    %89 = vmatprep.subr.mxu0 0.0
    %90 = vmatpush1.msra.mxu0 0.0
    %91 = vmatprep.subr.mxu0 0.0
    %92 = vmatpush1.msra.mxu0 0.0
    %93 = vmatprep.subr.mxu0 0.0
    %94 = vmatpush1.msra.mxu0 0.0
    %95 = vmatprep.subr.mxu0 0.0
    %96 = vmatpush1.msra.mxu0 0.0
    %97 = vmatprep.subr.mxu0 0.0
    %98 = vmatpush1.msra.mxu0 0.0
    %99 = vmatprep.subr.mxu0 0.0
    %100 = vmatpush1.msra.mxu0 0.0
    %101 = vmatprep.subr.mxu0 0.0
    %102 = vmatpush1.msra.mxu0 0.0
    %103 = vmatprep.subr.mxu0 0.0
    %104 = vmatpush1.msra.mxu0 0.0
    %105 = vmatprep.subr.mxu0 0.0
    %106 = vmatpush1.msra.mxu0 0.0
    %107 = vmatprep.subr.mxu0 0.0
    %108 = vmatpush1.msra.mxu0 0.0
    %109 = vmatprep.subr.mxu0 0.0
    %110 = vmatpush1.msra.mxu0 0.0
    %111 = vmatprep.subr.mxu0 0.0
    %112 = vmatpush1.msra.mxu0 0.0
    %113 = vmatprep.subr.mxu0 0.0
    %114 = vmatpush1.msra.mxu0 0.0
    %115 = vmatprep.subr.mxu0 0.0
    %116 = vmatpush1.msra.mxu0 0.0
    %117 = vmatprep.mubr.f32.mxu0 0.0
    %118 = vmatmul.mubr.f32.gmra.mrb[0].mxu0 %v35
    %v119 = vpop.f32.mrb[0].mxu0
    %v120 = vadd.f32 0.0, %v119
    %v121 = vpop.f32.mrb[0].mxu0
    %122 = vmatprep.mubr.f32.mxu0 0.0
    %123 = vmatmul.mubr.f32.gmra.mrb[0].mxu0 %v36
    %v124 = vpop.f32.mrb[0].mxu0
    %v125 = vadd.f32 0.0, %v124
    %v126 = vpop.f32.mrb[0].mxu0
    %127 = vdwg.mxu0
    %v128 = vld [vmem:[%s2] sm:$0xff]
    %v129 = vld [vmem:[%s2 + $0x8] sm:$0xff]
    %v130 = vld [vmem:[%s2 + $0x10] sm:$0xff]
    %v131 = vld [vmem:[%s2 + $0x18] sm:$0xff]
    %vm132 = vcmask 261120
    %v134 = vsel %vm132, %v120, 0
    %v137 = vsel %vm132, %v125, 0
    %139 = vmatprep.subr.mxu0 0.0
    %140 = vmatpush1.msra.mxu0 %v128
    %141 = vmatprep.subr.mxu0 0.0
    %142 = vmatpush1.msra.mxu0 %v129
    %143 = vmatprep.subr.mxu0 0.0
    %144 = vmatpush1.msra.mxu0 %v130
    %145 = vmatprep.subr.mxu0 0.0
    %146 = vmatpush1.msra.mxu0 %v131
    %147 = vmatprep.subr.mxu0 0.0
    %148 = vmatpush1.msra.mxu0 0.0
    %149 = vmatprep.subr.mxu0 0.0
    %150 = vmatpush1.msra.mxu0 0.0
    %151 = vmatprep.subr.mxu0 0.0
    %152 = vmatpush1.msra.mxu0 0.0
    %153 = vmatprep.subr.mxu0 0.0
    %154 = vmatpush1.msra.mxu0 0.0
    %155 = vmatprep.subr.mxu0 0.0
    %156 = vmatpush1.msra.mxu0 0.0
    %157 = vmatprep.subr.mxu0 0.0
    %158 = vmatpush1.msra.mxu0 0.0
    %159 = vmatprep.subr.mxu0 0.0
    %160 = vmatpush1.msra.mxu0 0.0
    %161 = vmatprep.subr.mxu0 0.0
    %162 = vmatpush1.msra.mxu0 0.0
    %163 = vmatprep.subr.mxu0 0.0
    %164 = vmatpush1.msra.mxu0 0.0
    %165 = vmatprep.subr.mxu0 0.0
    %166 = vmatpush1.msra.mxu0 0.0
    %167 = vmatprep.subr.mxu0 0.0
    %168 = vmatpush1.msra.mxu0 0.0
    %169 = vmatprep.subr.mxu0 0.0
    %170 = vmatpush1.msra.mxu0 0.0
    %171 = vmatprep.subr.mxu0 0.0
    %172 = vmatpush1.msra.mxu0 0.0
    %173 = vmatprep.subr.mxu0 0.0
    %174 = vmatpush1.msra.mxu0 0.0
    %175 = vmatprep.subr.mxu0 0.0
    %176 = vmatpush1.msra.mxu0 0.0
    %177 = vmatprep.subr.mxu0 0.0
    %178 = vmatpush1.msra.mxu0 0.0
    %179 = vmatprep.subr.mxu0 0.0
    %180 = vmatpush1.msra.mxu0 0.0
    %181 = vmatprep.subr.mxu0 0.0
    %182 = vmatpush1.msra.mxu0 0.0
    %183 = vmatprep.subr.mxu0 0.0
    %184 = vmatpush1.msra.mxu0 0.0
    %185 = vmatprep.subr.mxu0 0.0
    %186 = vmatpush1.msra.mxu0 0.0
    %187 = vmatprep.subr.mxu0 0.0
    %188 = vmatpush1.msra.mxu0 0.0
    %189 = vmatprep.subr.mxu0 0.0
    %190 = vmatpush1.msra.mxu0 0.0
    %191 = vmatprep.subr.mxu0 0.0
    %192 = vmatpush1.msra.mxu0 0.0
    %193 = vmatprep.subr.mxu0 0.0
    %194 = vmatpush1.msra.mxu0 0.0
    %195 = vmatprep.subr.mxu0 0.0
    %196 = vmatpush1.msra.mxu0 0.0
    %197 = vmatprep.subr.mxu0 0.0
    %198 = vmatpush1.msra.mxu0 0.0
    %199 = vmatprep.subr.mxu0 0.0
    %200 = vmatpush1.msra.mxu0 0.0
    %201 = vmatprep.subr.mxu0 0.0
    %202 = vmatpush1.msra.mxu0 0.0
    %203 = vmatprep.mubr.f32.mxu0 0.0
    %204 = vmatmul.mubr.f32.gmra.mrb[0].mxu0 %v134
    %v205 = vpop.f32.mrb[0].mxu0
    %v206 = vadd.f32 0.0, %v205
    %v207 = vpop.f32.mrb[0].mxu0
    %208 = vmatprep.mubr.f32.mxu0 0.0
    %209 = vmatmul.mubr.f32.gmra.mrb[0].mxu0 %v137
    %v210 = vpop.f32.mrb[0].mxu0
    %v211 = vadd.f32 0.0, %v210
    %v212 = vpop.f32.mrb[0].mxu0
    %213 = vdwg.mxu0
    %v214 = vtanh.pop %v206
    %v215 = vtanh.pop %v211
    %v216 = vld [vmem:[%s3] sm:$0xff]
    %v217 = vld [vmem:[%s3 + $0x8] sm:$0xff]
    %v218 = vld [vmem:[%s3 + $0x10] sm:$0xff]
    %v219 = vld [vmem:[%s3 + $0x18] sm:$0xff]
    %v221 = vsel %vm132, %v214, 0
    %v224 = vsel %vm132, %v215, 0
    %226 = vmatprep.subr.mxu0 0.0
    %227 = vmatpush1.msra.mxu0 %v216
    %228 = vmatprep.subr.mxu0 0.0
    %229 = vmatpush1.msra.mxu0 %v217
    %230 = vmatprep.subr.mxu0 0.0
    %231 = vmatpush1.msra.mxu0 %v218
    %232 = vmatprep.subr.mxu0 0.0
    %233 = vmatpush1.msra.mxu0 %v219
    %234 = vmatprep.subr.mxu0 0.0
    %235 = vmatpush1.msra.mxu0 0.0
    %236 = vmatprep.subr.mxu0 0.0
    %237 = vmatpush1.msra.mxu0 0.0
    %238 = vmatprep.subr.mxu0 0.0
    %239 = vmatpush1.msra.mxu0 0.0
    %240 = vmatprep.subr.mxu0 0.0
    %241 = vmatpush1.msra.mxu0 0.0
    %242 = vmatprep.subr.mxu0 0.0
    %243 = vmatpush1.msra.mxu0 0.0
    %244 = vmatprep.subr.mxu0 0.0
    %245 = vmatpush1.msra.mxu0 0.0
    %246 = vmatprep.subr.mxu0 0.0
    %247 = vmatpush1.msra.mxu0 0.0
    %248 = vmatprep.subr.mxu0 0.0
    %249 = vmatpush1.msra.mxu0 0.0
    %250 = vmatprep.subr.mxu0 0.0
    %251 = vmatpush1.msra.mxu0 0.0
    %252 = vmatprep.subr.mxu0 0.0
    %253 = vmatpush1.msra.mxu0 0.0
    %254 = vmatprep.subr.mxu0 0.0
    %255 = vmatpush1.msra.mxu0 0.0
    %256 = vmatprep.subr.mxu0 0.0
    %257 = vmatpush1.msra.mxu0 0.0
    %258 = vmatprep.subr.mxu0 0.0
    %259 = vmatpush1.msra.mxu0 0.0
    %260 = vmatprep.subr.mxu0 0.0
    %261 = vmatpush1.msra.mxu0 0.0
    %262 = vmatprep.subr.mxu0 0.0
    %263 = vmatpush1.msra.mxu0 0.0
    %264 = vmatprep.subr.mxu0 0.0
    %265 = vmatpush1.msra.mxu0 0.0
    %266 = vmatprep.subr.mxu0 0.0
    %267 = vmatpush1.msra.mxu0 0.0
    %268 = vmatprep.subr.mxu0 0.0
    %269 = vmatpush1.msra.mxu0 0.0
    %270 = vmatprep.subr.mxu0 0.0
    %271 = vmatpush1.msra.mxu0 0.0
    %272 = vmatprep.subr.mxu0 0.0
    %273 = vmatpush1.msra.mxu0 0.0
    %274 = vmatprep.subr.mxu0 0.0
    %275 = vmatpush1.msra.mxu0 0.0
    %276 = vmatprep.subr.mxu0 0.0
    %277 = vmatpush1.msra.mxu0 0.0
    %278 = vmatprep.subr.mxu0 0.0
    %279 = vmatpush1.msra.mxu0 0.0
    %280 = vmatprep.subr.mxu0 0.0
    %281 = vmatpush1.msra.mxu0 0.0
    %282 = vmatprep.subr.mxu0 0.0
    %283 = vmatpush1.msra.mxu0 0.0
    %284 = vmatprep.subr.mxu0 0.0
    %285 = vmatpush1.msra.mxu0 0.0
    %286 = vmatprep.subr.mxu0 0.0
    %287 = vmatpush1.msra.mxu0 0.0
    %288 = vmatprep.subr.mxu0 0.0
    %289 = vmatpush1.msra.mxu0 0.0
    %290 = vmatprep.mubr.f32.mxu0 0.0
    %291 = vmatmul.mubr.f32.gmra.mrb[0].mxu0 %v221
    %v292 = vpop.f32.mrb[0].mxu0
    %v293 = vadd.f32 0.0, %v292
    %v294 = vpop.f32.mrb[0].mxu0
    %295 = vmatprep.mubr.f32.mxu0 0.0
    %296 = vmatmul.mubr.f32.gmra.mrb[0].mxu0 %v224
    %v297 = vpop.f32.mrb[0].mxu0
    %v298 = vadd.f32 0.0, %v297
    %v299 = vpop.f32.mrb[0].mxu0
    %300 = vdwg.mxu0
    %301 = vmax.xlane.f32.xlu0 %v293
    %v302 = vpop.xlane.xlu0 %301
    %303 = vmax.xlane.f32.xlu0 %v298
    %v304 = vpop.xlane.xlu0 %303
    %vm305 = vcmp.eq.f32.partialorder %v293, %v302
    %vm306 = vcmp.eq.f32.partialorder %v298, %v304
    %v307 = vsel %vm305, %v24, 128
    %v308 = vsel %vm306, %v24, 128
    %v309 = vand.u32 %v307, 65535
    %v310 = vshra.s32 %v307, 16
    %v311 = vcvt.s32.f32 %v309
    %v312 = vcvt.s32.f32 %v310
    %313 = vmin.xlane.f32.xlu0 %v312
    %v314 = vpop.xlane.xlu0 %313
    %vm315 = vcmp.eq.f32.partialorder %v312, %v314
    %v316 = vsel %vm315, %v311, inf
    %317 = vmin.xlane.f32.xlu0 %v316
    %v318 = vpop.xlane.xlu0 %317
    %v319 = vcvt.f32.s32 %v318
    %v320 = vcvt.f32.s32 %v314
    %v321 = vshll.u32 %v320, 16
    %v322 = vadd.s32 %v321, %v319
    %v323 = vand.u32 %v308, 65535
    %v324 = vshra.s32 %v308, 16
    %v325 = vcvt.s32.f32 %v323
    %v326 = vcvt.s32.f32 %v324
    %327 = vmin.xlane.f32.xlu0 %v326
    %v328 = vpop.xlane.xlu0 %327
    %vm329 = vcmp.eq.f32.partialorder %v326, %v328
    %v330 = vsel %vm329, %v325, inf
    %331 = vmin.xlane.f32.xlu0 %v330
    %v332 = vpop.xlane.xlu0 %331
    %v333 = vcvt.f32.s32 %v332
    %v334 = vcvt.f32.s32 %v328
    %v335 = vshll.u32 %v334, 16
    %v336 = vadd.s32 %v335, %v333
    %v337 = vsub.f32 %v293, %v302
    %v338 = vsub.f32 %v298, %v304
    %v339 = vmul.f32 %v337, 1.442695
    %v340 = vpow.pop %v339
    %v341 = vmul.f32 %v338, 1.442695
    %v342 = vpow.pop %v341
    %343 = vadd.xlane.f32.xlu0 %v340
    %v344 = vpop.xlane.xlu0 %343
    %345 = vadd.xlane.f32.xlu0 %v342
    %v346 = vpop.xlane.xlu0 %345
    %v347 = vrcp.pop %v344
    %v348 = vrcp.pop %v346
    %v349 = vmax.f32 %v347, %v348
    %v350 = vrot.slane %v349, 4
    %v351 = vmax.f32 %v349, %v350
    %v352 = vrot.slane %v351, 2
    %v353 = vmax.f32 %v351, %v352
    %v354 = vrot.slane %v353, 1
    %v355 = vmax.f32 %v353, %v354
    %s356 = vtos %v355
    %v357 = vlaneseq
    %v358 = vshrl.u32 %v357, 7
    %v359 = vadd.s32 %v358, 8
    %v360 = vstv %s356
    %vm361 = vcmp.eq.f32.partialorder %v347, %v360
    %vm362 = vcmp.eq.f32.partialorder %v348, %v360
    %v363 = vmul.u32 %v358, 128
    %v364 = vmul.u32 %v359, 128
    %v365 = vadd.s32 %v363, %v322
    %v366 = vadd.s32 %v364, %v336
    %v367 = vsel %vm361, %v365, 2048
    %v368 = vsel %vm362, %v366, 2048
    %vm369 = vcmp.lt.s32.totalorder %v367, %v368
    %v370 = vsel %vm369, %v367, %v368
    %v371 = vrot.slane %v370, 4
    %vm372 = vcmp.lt.s32.totalorder %v370, %v371
    %v373 = vsel %vm372, %v370, %v371
    %v374 = vrot.slane %v373, 2
    %vm375 = vcmp.lt.s32.totalorder %v373, %v374
    %v376 = vsel %vm375, %v373, %v374
    %v377 = vrot.slane %v376, 1
    %vm378 = vcmp.lt.s32.totalorder %v376, %v377
    %v379 = vsel %vm378, %v376, %v377
    %s380 = vtos %v379
    %s381 = scalar_lea.smem [#allocation2], 0
    %382 = sst [smem:[%s381]] %s380
    %s383 = scalar_lea.smem [#allocation4], 0
    %384 = sst [smem:[%s383]] %s356
    // Predicated region
    $region18: #{policy_sample.1} parent=1 // pred_check
      _
    $region19: #{policy_sample.1} parent=1 // pred_check_branch
      %386 = sbr.rel (0) target = $region21
    $region20: #{policy_sample.1} parent=1 // pred_region
      %s388 = ssub.s32 16, 16
      %389 = vsyncadd [#allocation3], %s388
      %392 = dma.smem_to_hbm [#allocation2], 16, %s4, [#allocation3]
    $region21: #{policy_sample.1} parent=1 // pred_fallthru
      _
    // Predicated region
    $region22: #{policy_sample.1} parent=1 // pred_check
      _
    $region23: #{policy_sample.1} parent=1 // pred_check_branch
      %394 = sbr.rel (0) target = $region25
    $region24: #{policy_sample.1} parent=1 // pred_region
      %s396 = ssub.s32 16, 16
      %397 = vsyncadd [#allocation5], %s396
      %400 = dma.smem_to_hbm [#allocation4], 16, %s5, [#allocation5]
    $region25: #{policy_sample.1} parent=1 // pred_fallthru
      _
    // Predicated region
    $region26: #{policy_sample.1} parent=1 // pred_check
      _
    $region27: #{policy_sample.1} parent=1 // pred_check_branch
      %402 = sbr.rel (0) target = $region29
    $region28: #{policy_sample.1} parent=1 // pred_region
      %403 = dma.done [#allocation3], 16
    $region29: #{policy_sample.1} parent=1 // pred_fallthru
      _
    // Predicated region
    $region30: #{policy_sample.1} parent=1 // pred_check
      _
    $region31: #{policy_sample.1} parent=1 // pred_check_branch
      %405 = sbr.rel (0) target = $region33
    $region32: #{policy_sample.1} parent=1 // pred_region
      %406 = dma.done [#allocation5], 16
    $region33: #{policy_sample.1} parent=1 // pred_fallthru
      _
    %407 = sfence
    %408 = vsyncpa [#allocation3], 1
    %409 = vsyncpa [#allocation5], 1

</llo_original>
